<compile_context>
chip_gen: v5e
topology: v5e:2x2
jax: 0.10.0
libtpu: 0.0.40
codegen_flags: <defaults>
</compile_context>

<pallas_src>
import functools

import jax
import jax.numpy as jnp
from jax.experimental import pallas as pl
from jax.experimental.pallas import tpu as pltpu


# --------------------------------------------------------------------------
# Kernels
# --------------------------------------------------------------------------
def _larn_fused_kernel(x_ref, m_ref, g_ref, b_ref, o_ref, *,
                       epsilon, hw, binary_mask):
    """Single-pass kernel: one (block_c, HWp) tile per grid step."""
    x = x_ref[...].astype(jnp.float32)        # (BC, HWp)
    m = m_ref[...].astype(jnp.float32)        # (1, HWp) or (BC, HWp)

    # --- single-sweep moment sums (few live full-width temporaries) -------
    y = (x * m) if binary_mask else (x * m) * m          # y_p = X_p * m
    s_m = jnp.sum(m, axis=-1, keepdims=True)
    s_p = jnp.sum(y, axis=-1, keepdims=True)
    s_pp = jnp.sum(y * y, axis=-1, keepdims=True)

    om = 1.0 - m
    y = (x * om) if binary_mask else (x * om) * om       # y_q = X_q * (1-m)
    s_q = jnp.sum(y, axis=-1, keepdims=True)
    s_qq = jnp.sum(y * y, axis=-1, keepdims=True)

    # --- narrow (per-row) math --------------------------------------------
    gamma = g_ref[...].astype(jnp.float32)    # (BC, 1)
    beta = b_ref[...].astype(jnp.float32)     # (BC, 1)

    denom_p = s_m + epsilon
    denom_q = (hw - s_m) + epsilon            # sum(1-m) == HW - sum(m)
    mean_p = s_p / denom_p
    mean_q = s_q / denom_q
    # sum((y - mean)^2) over the true HW positions (padded y == 0):
    ss_p = s_pp - 2.0 * mean_p * s_p + hw * mean_p * mean_p
    ss_q = s_qq - 2.0 * mean_q * s_q + hw * mean_q * mean_q
    std_p = jnp.sqrt(ss_p / denom_p + epsilon)
    std_q = jnp.sqrt(ss_q / denom_q + epsilon)

    # Fold normalization into per-row scale/shift:
    #   t = (x*m - mean_p)/std_p * std_q * gamma + mean_q*beta
    #     = (x*m)*scale + shift
    scale = gamma * (std_q / std_p)
    shift = mean_q * beta - mean_p * scale

    # --- short full-width epilogue (re-read tiles; VMEM loads are cheap) ---
    x = x_ref[...].astype(jnp.float32)
    m = m_ref[...].astype(jnp.float32)
    t = (x * m) * scale + shift
    o_ref[...] = (x + (t - x) * m).astype(o_ref.dtype)   # == t*m + x*(1-m)


def _larn_stats_kernel(x_ref, m_ref, g_ref, b_ref, scale_ref, shift_ref,
                       sm_acc, sp_acc, spp_acc, sq_acc, sqq_acc, *,
                       epsilon, hw, binary_mask):
    """Pass 1 of the HW-split path: accumulate moments over HW blocks."""
    j = pl.program_id(2)

    @pl.when(j == 0)
    def _init():
        sm_acc[...] = jnp.zeros_like(sm_acc)
        sp_acc[...] = jnp.zeros_like(sp_acc)
        spp_acc[...] = jnp.zeros_like(spp_acc)
        sq_acc[...] = jnp.zeros_like(sq_acc)
        sqq_acc[...] = jnp.zeros_like(sqq_acc)

    x = x_ref[...].astype(jnp.float32)
    m = m_ref[...].astype(jnp.float32)

    y = (x * m) if binary_mask else (x * m) * m
    s_m = jnp.sum(m, axis=-1, keepdims=True)
    sm_acc[...] += jnp.broadcast_to(s_m, sm_acc.shape)   # shared-mask case
    sp_acc[...] += jnp.sum(y, axis=-1, keepdims=True)
    spp_acc[...] += jnp.sum(y * y, axis=-1, keepdims=True)

    om = 1.0 - m
    y = (x * om) if binary_mask else (x * om) * om
    sq_acc[...] += jnp.sum(y, axis=-1, keepdims=True)
    sqq_acc[...] += jnp.sum(y * y, axis=-1, keepdims=True)

    @pl.when(j == pl.num_programs(2) - 1)
    def _finalize():
        gamma = g_ref[...].astype(jnp.float32)
        beta = b_ref[...].astype(jnp.float32)
        s_m = sm_acc[...]
        s_p = sp_acc[...]
        s_pp = spp_acc[...]
        s_q = sq_acc[...]
        s_qq = sqq_acc[...]
        denom_p = s_m + epsilon
        denom_q = (hw - s_m) + epsilon
        mean_p = s_p / denom_p
        mean_q = s_q / denom_q
        ss_p = s_pp - 2.0 * mean_p * s_p + hw * mean_p * mean_p
        ss_q = s_qq - 2.0 * mean_q * s_q + hw * mean_q * mean_q
        std_p = jnp.sqrt(ss_p / denom_p + epsilon)
        std_q = jnp.sqrt(ss_q / denom_q + epsilon)
        scale = gamma * (std_q / std_p)
        shift = mean_q * beta - mean_p * scale
        scale_ref[...] = scale
        shift_ref[...] = shift


def _larn_apply_kernel(x_ref, m_ref, scale_ref, shift_ref, o_ref):
    """Pass 2 of the HW-split path: out = x + ((x*m)*scale + shift - x)*m."""
    x = x_ref[...].astype(jnp.float32)
    m = m_ref[...].astype(jnp.float32)
    t = (x * m) * scale_ref[...] + shift_ref[...]
    o_ref[...] = (x + (t - x) * m).astype(o_ref.dtype)


# --------------------------------------------------------------------------
# Tiling / VMEM planning
# --------------------------------------------------------------------------
def _round_up(a, b):
    return ((a + b - 1) // b) * b


def _vmem_budget():
    """Generation-aware VMEM budget (streams) and scoped-VMEM limit."""
    try:
        cap = int(pltpu.get_tpu_info().vmem_capacity_bytes)
    except Exception:
        cap = 64 * 1024 * 1024        # conservative fallback (v7x-sized)
    vmem_limit = cap // 2             # leave headroom for compiler scratch
    budget = vmem_limit // 2          # double-buffered stream budget
    return budget, vmem_limit


def _plan_tiles(C, HW, x_bytes, m_bytes, shared_mask, budget_bytes):
    """Pick ('fused'|'split', block_c, block_hw) from a VMEM byte budget."""
    round_to = 16 if x_bytes < 4 else 8        # sublane packing for bf16
    hw_full = _round_up(HW, 128)               # lane-dense last dim
    # Per channel-row bytes: double-buffered x-in + out (+ m if per-channel)
    # plus ~4 live f32 full-width temporaries inside the kernel.
    extra_m = 0 if shared_mask else 2 * m_bytes
    per_row = hw_full * (4 * x_bytes + extra_m + 16)
    max_rows = budget_bytes // per_row
    if C <= max_rows:
        return "fused", int(C), int(hw_full)
    if max_rows >= round_to:
        return "fused", int((max_rows // round_to) * round_to), int(hw_full)
    # Even a minimal channel block with the full feature map does not fit:
    # split HW and run the two-pass (stats -> apply) pipeline.
    block_c = C if C <= round_to else round_to
    per_col = block_c * (4 * x_bytes + extra_m + 16)
    max_hw = (budget_bytes // per_col) // 128 * 128
    block_hw = int(min(hw_full, max(128, max_hw)))
    return "split", int(block_c), block_hw


# --------------------------------------------------------------------------
# Wrapper
# --------------------------------------------------------------------------
def larn_forward(x, m, gamma, beta, epsilon=1e-5, *,
                 assume_binary_mask=False,
                 vmem_budget_bytes=None,
                 block_c_override=None):
    """x: (N, C, H, W).  m: (N, 1, H, W) or (N, C, H, W) mask.
    gamma, beta: (1, C, 1, 1)."""
    N, C, H, W = x.shape
    HW = H * W
    Nm, Cm, Hm, Wm = m.shape
    assert Nm == N and Hm == H and Wm == W and Cm in (1, C)
    shared_mask = (Cm == 1)

    budget, vmem_limit = _vmem_budget()
    if vmem_budget_bytes is not None:
        budget = int(vmem_budget_bytes)

    x_bytes = x.dtype.itemsize
    m_bytes = m.dtype.itemsize

    mode, block_c, block_hw = _plan_tiles(C, HW, x_bytes, m_bytes,
                                          shared_mask, budget)
    if block_c_override is not None:
        block_c = int(block_c_override)

    HWp = block_hw if mode == "fused" else _round_up(HW, block_hw)

    # Keep x/m in their native dtype (no host-side f32 copy of the big
    # tensors); only pad HW to a lane-dense width when needed.
    x3 = x.reshape(N, C, HW)
    m3 = m.reshape(N, Cm, HW)
    if HWp != HW:
        pad = HWp - HW
        x3 = jnp.pad(x3, ((0, 0), (0, 0), (0, pad)))
        m3 = jnp.pad(m3, ((0, 0), (0, 0), (0, pad)))
    g3 = gamma.reshape(1, C, 1).astype(jnp.float32)
    b3 = beta.reshape(1, C, 1).astype(jnp.float32)

    num_c_blocks = -(-C // block_c)
    eps = float(epsilon)
    hw_f = float(HW)

    if mode == "fused":
        kernel = functools.partial(_larn_fused_kernel, epsilon=eps, hw=hw_f,
                                   binary_mask=assume_binary_mask)
        if shared_mask:
            m_spec = pl.BlockSpec((None, 1, HWp), lambda n, c: (n, 0, 0))
        else:
            m_spec = pl.BlockSpec((None, block_c, HWp), lambda n, c: (n, c, 0))

        out3 = pl.pallas_call(
            kernel,
            out_shape=jax.ShapeDtypeStruct((N, C, HWp), x.dtype),
            grid_spec=pltpu.PrefetchScalarGridSpec(
                num_scalar_prefetch=0,
                grid=(N, num_c_blocks),
                in_specs=[
                    pl.BlockSpec((None, block_c, HWp), lambda n, c: (n, c, 0)),
                    m_spec,
                    pl.BlockSpec((None, block_c, 1), lambda n, c: (0, c, 0)),
                    pl.BlockSpec((None, block_c, 1), lambda n, c: (0, c, 0)),
                ],
                out_specs=pl.BlockSpec((None, block_c, HWp),
                                       lambda n, c: (n, c, 0)),
            ),
            compiler_params=pltpu.CompilerParams(
                dimension_semantics=("parallel", "parallel"),
                vmem_limit_bytes=int(vmem_limit)),
            cost_estimate=pl.CostEstimate(
                flops=12 * N * C * HW,
                transcendentals=2 * N * C,
                bytes_accessed=int(2 * N * C * HWp * x_bytes
                                   + N * Cm * HWp * m_bytes)),
        )(x3, m3, g3, b3)
    else:
        # ------------------- two-pass HW-split fallback --------------------
        num_hw_blocks = HWp // block_hw
        if shared_mask:
            m_spec3 = pl.BlockSpec((None, 1, block_hw),
                                   lambda n, c, j: (n, 0, j))
        else:
            m_spec3 = pl.BlockSpec((None, block_c, block_hw),
                                   lambda n, c, j: (n, c, j))

        stats_kernel = functools.partial(_larn_stats_kernel, epsilon=eps,
                                         hw=hw_f,
                                         binary_mask=assume_binary_mask)
        scale3, shift3 = pl.pallas_call(
            stats_kernel,
            out_shape=(jax.ShapeDtypeStruct((N, C, 1), jnp.float32),
                       jax.ShapeDtypeStruct((N, C, 1), jnp.float32)),
            grid_spec=pltpu.PrefetchScalarGridSpec(
                num_scalar_prefetch=0,
                grid=(N, num_c_blocks, num_hw_blocks),
                in_specs=[
                    pl.BlockSpec((None, block_c, block_hw),
                                 lambda n, c, j: (n, c, j)),
                    m_spec3,
                    pl.BlockSpec((None, block_c, 1), lambda n, c, j: (0, c, 0)),
                    pl.BlockSpec((None, block_c, 1), lambda n, c, j: (0, c, 0)),
                ],
                out_specs=[
                    pl.BlockSpec((None, block_c, 1), lambda n, c, j: (n, c, 0)),
                    pl.BlockSpec((None, block_c, 1), lambda n, c, j: (n, c, 0)),
                ],
                scratch_shapes=[pltpu.VMEM((block_c, 1), jnp.float32)] * 5,
            ),
            compiler_params=pltpu.CompilerParams(
                dimension_semantics=("parallel", "parallel", "arbitrary"),
                vmem_limit_bytes=int(vmem_limit)),
            cost_estimate=pl.CostEstimate(
                flops=8 * N * C * HW,
                transcendentals=2 * N * C,
                bytes_accessed=int(N * C * HWp * x_bytes
                                   + N * Cm * HWp * m_bytes)),
        )(x3, m3, g3, b3)

        out3 = pl.pallas_call(
            _larn_apply_kernel,
            out_shape=jax.ShapeDtypeStruct((N, C, HWp), x.dtype),
            grid_spec=pltpu.PrefetchScalarGridSpec(
                num_scalar_prefetch=0,
                grid=(N, num_c_blocks, num_hw_blocks),
                in_specs=[
                    pl.BlockSpec((None, block_c, block_hw),
                                 lambda n, c, j: (n, c, j)),
                    m_spec3,
                    pl.BlockSpec((None, block_c, 1), lambda n, c, j: (n, c, 0)),
                    pl.BlockSpec((None, block_c, 1), lambda n, c, j: (n, c, 0)),
                ],
                out_specs=pl.BlockSpec((None, block_c, block_hw),
                                       lambda n, c, j: (n, c, j)),
            ),
            compiler_params=pltpu.CompilerParams(
                dimension_semantics=("parallel", "parallel", "parallel"),
                vmem_limit_bytes=int(vmem_limit)),
            cost_estimate=pl.CostEstimate(
                flops=6 * N * C * HW,
                transcendentals=0,
                bytes_accessed=int(2 * N * C * HWp * x_bytes
                                   + N * Cm * HWp * m_bytes)),
        )(x3, m3, scale3, shift3)

    if HWp != HW:
        out3 = out3[:, :, :HW]
    return out3.reshape(N, C, H, W)


# --------------------------------------------------------------------------
# Pure-JAX reference mirroring the PyTorch module
# --------------------------------------------------------------------------
def larn_reference(x, m, gamma, beta, epsilon=1e-5):
    def wmean(x_, m_):
        return jnp.sum(x_ * m_, axis=(2, 3), keepdims=True) / (
            jnp.sum(m_, axis=(2, 3), keepdims=True) + epsilon)

    def wstd(x_, m_, mu):
        return jnp.sqrt(
            jnp.sum((x_ * m_ - mu) ** 2, axis=(2, 3), keepdims=True)
            / (jnp.sum(m_, axis=(2, 3), keepdims=True) + epsilon) + epsilon)

    X_p = x * m
    X_q = x * (1.0 - m)
    X_p_mean = wmean(X_p, m)
    X_p_std = wstd(X_p, m, X_p_mean)
    X_q_mean = wmean(X_q, 1.0 - m)
    X_q_std = wstd(X_q, 1.0 - m, X_q_mean)
    t = (X_p - X_p_mean) / X_p_std * X_q_std * gamma + X_q_mean * beta
    return t * m + x * (1.0 - m)


if __name__ == "__main__":
    key = jax.random.PRNGKey(0)
    keys = jax.random.split(key, 8)

    # ------------------------------------------------------------------ 1
    N, C, H, W = 2, 4, 16, 16
    x = jax.random.normal(keys[0], (N, C, H, W), dtype=jnp.float32)
    m = (jax.random.uniform(keys[1], (N, 1, H, W)) > 0.5).astype(jnp.float32)
    gamma = jax.random.normal(keys[2], (1, C, 1, 1), dtype=jnp.float32)
    beta = jax.random.normal(keys[3], (1, C, 1, 1), dtype=jnp.float32)

    ref = larn_reference(x, jnp.broadcast_to(m, (N, C, H, W)), gamma, beta)

    out = jax.block_until_ready(larn_forward(x, m, gamma, beta))
    assert out.shape == (N, C, H, W)
    assert jnp.allclose(out, ref, atol=1e-4, rtol=1e-4), "fused path mismatch"

    # ------------------------------------------------------------------ 2
    # Force the two-pass HW-split fallback (tiny budget) on the same inputs.
    out2 = jax.block_until_ready(
        larn_forward(x, m, gamma, beta, vmem_budget_bytes=4096))
    assert jnp.allclose(out2, ref, atol=1e-4, rtol=1e-4), "split path mismatch"

    # ------------------------------------------------------------------ 3
    # Ragged channel blocks (C not a multiple of block_c) + lane-padded HW.
    N3, C3, H3, W3 = 2, 12, 10, 10
    x3 = jax.random.normal(keys[4], (N3, C3, H3, W3), dtype=jnp.float32)
    m3 = (jax.random.uniform(keys[5], (N3, 1, H3, W3)) > 0.5).astype(jnp.float32)
    g3 = jax.random.normal(keys[6], (1, C3, 1, 1), dtype=jnp.float32)
    b3 = jax.random.normal(keys[7], (1, C3, 1, 1), dtype=jnp.float32)
    ref3 = larn_reference(x3, jnp.broadcast_to(m3, (N3, C3, H3, W3)), g3, b3)
    out3 = jax.block_until_ready(
        larn_forward(x3, m3, g3, b3, block_c_override=8))
    assert jnp.allclose(out3, ref3, atol=1e-4, rtol=1e-4), "ragged-C mismatch"

    print("KERNEL_OK")
</pallas_src>

<mosaic_0001>
module attributes {stable_mosaic.version = 11 : i64} {
  func.func @_larn_fused_kernel(%arg0: i32, %arg1: i32, %arg2: memref<1x4x256xf32, #tpu.memory_space<vmem>>, %arg3: memref<1x1x256xf32, #tpu.memory_space<vmem>>, %arg4: memref<1x4x1xf32, #tpu.memory_space<vmem>>, %arg5: memref<1x4x1xf32, #tpu.memory_space<vmem>>, %arg6: memref<1x4x256xf32, #tpu.memory_space<vmem>>) attributes {dimension_semantics = [#tpu.dimension_semantics<parallel>, #tpu.dimension_semantics<parallel>], iteration_bounds = array<i64: 2, 1>, scalar_prefetch = 0 : i64, scratch_operands = 0 : i64, tpu.core_type = #tpu.core_type<tc>, window_params = [{transform_indices = @transform_0, window_bounds = array<i64: 1, 4, 256>}, {transform_indices = @transform_1, window_bounds = array<i64: 1, 1, 256>}, {transform_indices = @transform_2, window_bounds = array<i64: 1, 4, 1>}, {transform_indices = @transform_3, window_bounds = array<i64: 1, 4, 1>}, {transform_indices = @transform_4, window_bounds = array<i64: 1, 4, 256>}]} {
    %c0 = arith.constant 0 : index
    %c0_0 = arith.constant 0 : index
    %c0_1 = arith.constant 0 : index
    %0 = vector.load %arg2[%c0, %c0_0, %c0_1] : memref<1x4x256xf32, #tpu.memory_space<vmem>>, vector<1x4x256xf32>
    %1 = vector.shape_cast %0 : vector<1x4x256xf32> to vector<4x256xf32>
    %c0_2 = arith.constant 0 : index
    %c0_3 = arith.constant 0 : index
    %c0_4 = arith.constant 0 : index
    %2 = vector.load %arg3[%c0_2, %c0_3, %c0_4] : memref<1x1x256xf32, #tpu.memory_space<vmem>>, vector<1x1x256xf32>
    %3 = vector.shape_cast %2 : vector<1x1x256xf32> to vector<1x256xf32>
    %4 = vector.broadcast %3 : vector<1x256xf32> to vector<4x256xf32>
    %5 = arith.mulf %1, %4 : vector<4x256xf32>
    %6 = vector.broadcast %3 : vector<1x256xf32> to vector<4x256xf32>
    %7 = arith.mulf %5, %6 : vector<4x256xf32>
    %cst = arith.constant dense<0.000000e+00> : vector<1xf32>
    %8 = vector.multi_reduction <add>, %3, %cst [1] : vector<1x256xf32> to vector<1xf32>
    %9 = vector.shape_cast %8 : vector<1xf32> to vector<1x1xf32>
    %cst_5 = arith.constant dense<0.000000e+00> : vector<4xf32>
    %10 = vector.multi_reduction <add>, %7, %cst_5 [1] : vector<4x256xf32> to vector<4xf32>
    %11 = vector.shape_cast %10 : vector<4xf32> to vector<4x1xf32>
    %12 = arith.mulf %7, %7 : vector<4x256xf32>
    %cst_6 = arith.constant dense<0.000000e+00> : vector<4xf32>
    %13 = vector.multi_reduction <add>, %12, %cst_6 [1] : vector<4x256xf32> to vector<4xf32>
    %14 = vector.shape_cast %13 : vector<4xf32> to vector<4x1xf32>
    %cst_7 = arith.constant 1.000000e+00 : f32
    %15 = vector.broadcast %cst_7 : f32 to vector<1x256xf32>
    %16 = arith.subf %15, %3 : vector<1x256xf32>
    %17 = vector.broadcast %16 : vector<1x256xf32> to vector<4x256xf32>
    %18 = arith.mulf %1, %17 : vector<4x256xf32>
    %19 = vector.broadcast %16 : vector<1x256xf32> to vector<4x256xf32>
    %20 = arith.mulf %18, %19 : vector<4x256xf32>
    %cst_8 = arith.constant dense<0.000000e+00> : vector<4xf32>
    %21 = vector.multi_reduction <add>, %20, %cst_8 [1] : vector<4x256xf32> to vector<4xf32>
    %22 = vector.shape_cast %21 : vector<4xf32> to vector<4x1xf32>
    %23 = arith.mulf %20, %20 : vector<4x256xf32>
    %cst_9 = arith.constant dense<0.000000e+00> : vector<4xf32>
    %24 = vector.multi_reduction <add>, %23, %cst_9 [1] : vector<4x256xf32> to vector<4xf32>
    %25 = vector.shape_cast %24 : vector<4xf32> to vector<4x1xf32>
    %c0_10 = arith.constant 0 : index
    %c0_11 = arith.constant 0 : index
    %c0_12 = arith.constant 0 : index
    %26 = vector.load %arg4[%c0_10, %c0_11, %c0_12] : memref<1x4x1xf32, #tpu.memory_space<vmem>>, vector<1x4x1xf32>
    %27 = vector.shape_cast %26 : vector<1x4x1xf32> to vector<4x1xf32>
    %c0_13 = arith.constant 0 : index
    %c0_14 = arith.constant 0 : index
    %c0_15 = arith.constant 0 : index
    %28 = vector.load %arg5[%c0_13, %c0_14, %c0_15] : memref<1x4x1xf32, #tpu.memory_space<vmem>>, vector<1x4x1xf32>
    %29 = vector.shape_cast %28 : vector<1x4x1xf32> to vector<4x1xf32>
    %cst_16 = arith.constant 9.99999974E-6 : f32
    %30 = vector.broadcast %cst_16 : f32 to vector<1x1xf32>
    %31 = arith.addf %9, %30 : vector<1x1xf32>
    %cst_17 = arith.constant 2.560000e+02 : f32
    %32 = vector.broadcast %cst_17 : f32 to vector<1x1xf32>
    %33 = arith.subf %32, %9 : vector<1x1xf32>
    %cst_18 = arith.constant 9.99999974E-6 : f32
    %34 = vector.broadcast %cst_18 : f32 to vector<1x1xf32>
    %35 = arith.addf %33, %34 : vector<1x1xf32>
    %36 = vector.broadcast %31 : vector<1x1xf32> to vector<4x1xf32>
    %37 = arith.divf %11, %36 : vector<4x1xf32>
    %38 = vector.broadcast %35 : vector<1x1xf32> to vector<4x1xf32>
    %39 = arith.divf %22, %38 : vector<4x1xf32>
    %cst_19 = arith.constant 2.000000e+00 : f32
    %40 = vector.broadcast %cst_19 : f32 to vector<4x1xf32>
    %41 = arith.mulf %40, %37 : vector<4x1xf32>
    %42 = arith.mulf %41, %11 : vector<4x1xf32>
    %43 = arith.subf %14, %42 : vector<4x1xf32>
    %cst_20 = arith.constant 2.560000e+02 : f32
    %44 = vector.broadcast %cst_20 : f32 to vector<4x1xf32>
    %45 = arith.mulf %44, %37 : vector<4x1xf32>
    %46 = arith.mulf %45, %37 : vector<4x1xf32>
    %47 = arith.addf %43, %46 : vector<4x1xf32>
    %cst_21 = arith.constant 2.000000e+00 : f32
    %48 = vector.broadcast %cst_21 : f32 to vector<4x1xf32>
    %49 = arith.mulf %48, %39 : vector<4x1xf32>
    %50 = arith.mulf %49, %22 : vector<4x1xf32>
    %51 = arith.subf %25, %50 : vector<4x1xf32>
    %cst_22 = arith.constant 2.560000e+02 : f32
    %52 = vector.broadcast %cst_22 : f32 to vector<4x1xf32>
    %53 = arith.mulf %52, %39 : vector<4x1xf32>
    %54 = arith.mulf %53, %39 : vector<4x1xf32>
    %55 = arith.addf %51, %54 : vector<4x1xf32>
    %56 = vector.broadcast %31 : vector<1x1xf32> to vector<4x1xf32>
    %57 = arith.divf %47, %56 : vector<4x1xf32>
    %cst_23 = arith.constant 9.99999974E-6 : f32
    %58 = vector.broadcast %cst_23 : f32 to vector<4x1xf32>
    %59 = arith.addf %57, %58 : vector<4x1xf32>
    %60 = math.sqrt %59 : vector<4x1xf32>
    %61 = vector.broadcast %35 : vector<1x1xf32> to vector<4x1xf32>
    %62 = arith.divf %55, %61 : vector<4x1xf32>
    %cst_24 = arith.constant 9.99999974E-6 : f32
    %63 = vector.broadcast %cst_24 : f32 to vector<4x1xf32>
    %64 = arith.addf %62, %63 : vector<4x1xf32>
    %65 = math.sqrt %64 : vector<4x1xf32>
    %66 = arith.divf %65, %60 : vector<4x1xf32>
    %67 = arith.mulf %27, %66 : vector<4x1xf32>
    %68 = arith.mulf %39, %29 : vector<4x1xf32>
    %69 = arith.mulf %37, %67 : vector<4x1xf32>
    %70 = arith.subf %68, %69 : vector<4x1xf32>
    %c0_25 = arith.constant 0 : index
    %c0_26 = arith.constant 0 : index
    %c0_27 = arith.constant 0 : index
    %71 = vector.load %arg2[%c0_25, %c0_26, %c0_27] : memref<1x4x256xf32, #tpu.memory_space<vmem>>, vector<1x4x256xf32>
    %72 = vector.shape_cast %71 : vector<1x4x256xf32> to vector<4x256xf32>
    %c0_28 = arith.constant 0 : index
    %c0_29 = arith.constant 0 : index
    %c0_30 = arith.constant 0 : index
    %73 = vector.load %arg3[%c0_28, %c0_29, %c0_30] : memref<1x1x256xf32, #tpu.memory_space<vmem>>, vector<1x1x256xf32>
    %74 = vector.shape_cast %73 : vector<1x1x256xf32> to vector<1x256xf32>
    %75 = vector.broadcast %74 : vector<1x256xf32> to vector<4x256xf32>
    %76 = arith.mulf %72, %75 : vector<4x256xf32>
    %77 = vector.broadcast %67 : vector<4x1xf32> to vector<4x256xf32>
    %78 = arith.mulf %76, %77 : vector<4x256xf32>
    %79 = vector.broadcast %70 : vector<4x1xf32> to vector<4x256xf32>
    %80 = arith.addf %78, %79 : vector<4x256xf32>
    %81 = arith.subf %80, %72 : vector<4x256xf32>
    %82 = vector.broadcast %74 : vector<1x256xf32> to vector<4x256xf32>
    %83 = arith.mulf %81, %82 : vector<4x256xf32>
    %84 = arith.addf %72, %83 : vector<4x256xf32>
    %c0_31 = arith.constant 0 : index
    %c0_32 = arith.constant 0 : index
    %c0_33 = arith.constant 0 : index
    %85 = vector.load %arg6[%c0_31, %c0_32, %c0_33] : memref<1x4x256xf32, #tpu.memory_space<vmem>>, vector<1x4x256xf32>
    %86 = vector.shape_cast %85 : vector<1x4x256xf32> to vector<4x256xf32>
    %87 = vector.shape_cast %84 : vector<4x256xf32> to vector<1x4x256xf32>
    tpu.vector_store %arg6[%c0_31, %c0_32, %c0_33], %87 {strides = array<i32>} : memref<1x4x256xf32, #tpu.memory_space<vmem>>, vector<1x4x256xf32>,
    return
  }
  func.func @transform_0(%arg0: i32, %arg1: i32) -> (i32, i32, i32) {
    %c0_i32 = arith.constant 0 : i32
    %c0_i32_0 = arith.constant 0 : i32
    return %arg0, %arg1, %c0_i32 : i32, i32, i32
  }
  func.func @transform_1(%arg0: i32, %arg1: i32) -> (i32, i32, i32) {
    %c0_i32 = arith.constant 0 : i32
    %c0_i32_0 = arith.constant 0 : i32
    %c0_i32_1 = arith.constant 0 : i32
    return %arg0, %c0_i32, %c0_i32_0 : i32, i32, i32
  }
  func.func @transform_2(%arg0: i32, %arg1: i32) -> (i32, i32, i32) {
    %c0_i32 = arith.constant 0 : i32
    %c0_i32_0 = arith.constant 0 : i32
    %c0_i32_1 = arith.constant 0 : i32
    return %c0_i32, %arg1, %c0_i32_0 : i32, i32, i32
  }
  func.func @transform_3(%arg0: i32, %arg1: i32) -> (i32, i32, i32) {
    %c0_i32 = arith.constant 0 : i32
    %c0_i32_0 = arith.constant 0 : i32
    %c0_i32_1 = arith.constant 0 : i32
    return %c0_i32, %arg1, %c0_i32_0 : i32, i32, i32
  }
  func.func @transform_4(%arg0: i32, %arg1: i32) -> (i32, i32, i32) {
    %c0_i32 = arith.constant 0 : i32
    %c0_i32_0 = arith.constant 0 : i32
    return %arg0, %arg1, %c0_i32 : i32, i32, i32
  }
}

</mosaic_0001>

<llo_original>
// kernel: tpu_custom_call.1
$region0: #{tpu_custom_call.1}
  #allocation0 [shape = 'u32[]', space=smem, size = 0x4, offset = 0x4, fixed_abs, tag = 'smem constant byte address 0x4 - core index']
  #allocation1 [shape = 'u32[72,128]{1,0:T(1,128)}', space=vmem, size = 0x9000, scoped, tag = 'internal scratch']
  %s0 = inlined_call_operand.hbm [shape: f32[2,4,256], index: 0, kind: input, shape index: {}]
  %s1 = inlined_call_operand.vmem [shape: f32[2,1,256], index: 1, kind: input, shape index: {}]
  %s2 = inlined_call_operand.vmem [shape: f32[1,4,1], index: 2, kind: input, shape index: {}]
  %s3 = inlined_call_operand.vmem [shape: f32[1,4,1], index: 3, kind: input, shape index: {}]
  %s4 = inlined_call_operand.hbm [shape: f32[2,4,256], index: 4, kind: output, shape index: {}]
  %s5 = sld [smem:[#allocation0]]
  $region53: #{tpu_custom_call.1} parent=0
    _
  %s7 = ssub.s32 1, %s5
  %s8 = scalar_select 0, %s7, %s5
  $region1: #{tpu_custom_call.1} parent=0
    #allocation2 [shape = 'u8[8192]{0}', space=vmem, size = 0x2000, scoped, tag = 'input window, operand 0']
    #allocation3 [shape = 's32[2]{0}', space=sflag, size = 0x8, scoped, tag = 'scoped memory for tpu_custom_call.1']
    #allocation4 [shape = 's32[2]{0}', space=sflag, size = 0x8, scoped, tag = 'scoped memory for tpu_custom_call.1']
    #allocation5 [shape = 'u8[8192]{0}', space=vmem, size = 0x2000, scoped, tag = 'output window, operand 0']
    %9 = vsyncpa [#allocation3], 0
    %s10 = scalar_lea.sflag [#allocation3], 1
    %11 = vsyncpa %s10, 0
    %12 = vsyncpa [#allocation4], 0
    %s13 = scalar_lea.sflag [#allocation4], 1
    %14 = vsyncpa %s13, 0
    loop: start=0, step=1, limit=4
    $region2: #{tpu_custom_call.1} parent=1 // loop_pre_header
      _
    $region3: #{tpu_custom_call.1} parent=1 // loop_header
      %s16 = sphi 0, %s20
      %p17 = scmp.ge.s32.totalorder %s16, 4
      %s23 = sphi 0, %s35
      %s24 = sphi 0, %s31
      %s25 = sphi 0, %s23
      %s26 = sphi 0, %s24
      %s27 = sphi 0, %s25
      %s28 = sphi 0, %s26
      %s40 = sphi 0, %s42
      %s43 = sphi 0, %s40
      %s44 = sphi 0, %s43
      %s60 = sphi 0, %s44
      %s66 = sphi 0, %s68
      %s69 = sphi 0, %s66
      %s70 = sphi 0, %s69
      %s86 = sphi 0, %s70
      %s92 = sphi 0, %s94
      %s95 = sphi 0, %s92
      %s96 = sphi 0, %s95
      %s112 = sphi 0, %s96
      %s118 = sphi 0, %s120
      %s121 = sphi 0, %s118
      %s122 = sphi 0, %s121
      %s138 = sphi 0, %s122
      %s146 = sphi 0, %s148
      %s149 = sphi 0, %s146
      %s150 = sphi 0, %s149
      %s166 = sphi 0, %s150
    $region4: #{tpu_custom_call.1} parent=1 // loop_header_branch
      %19 = sbr.rel (%p17) target = $region8
    $region5: #{tpu_custom_call.1} parent=1 // loop_body
      %s21 = ssub.s32 %s16, 1
      %s22 = ssub.s32 %s16, 2
      %s29 = sadd.s32 1, %s24
      %p30 = scmp.ge.s32.totalorder %s29, 1
      %s31 = scalar_select %p30, 0, %s29
      %s32 = sadd.s32 1, %s23
      %s33 = scalar_select %p30, %s32, %s23
      %p34 = scmp.ge.s32.totalorder %s33, 2
      %s35 = scalar_select %p34, 0, %s33
      %s36 = ssub.s32 %s23, %s35
      %s37 = ssub.s32 %s24, %s31
      %s38 = sor.u32 %s36, %s37
      %p39 = scmp.eq.s32.totalorder %s38, 0
      %s41 = sadd.s32 %s40, 1
      %s42 = scalar_select %p39, %s40, %s41
      %p45 = pneg %p39
      %p46 = scmp.eq.s32.totalorder %s16, 1
      %p47 = por %p45, %p46
      %p48 = scmp.ne.s32.totalorder %s40, %s43
      %p49 = scmp.eq.s32.totalorder %s16, 0
      %p50 = por %p48, %p49
      %p51 = scmp.ne.s32.totalorder %s40, %s43
      %p52 = scmp.eq.s32.totalorder %s21, 1
      %p53 = por %p51, %p52
      %p54 = scmp.ne.s32.totalorder %s43, %s44
      %p55 = scmp.eq.s32.totalorder %s21, 0
      %p56 = por %p54, %p55
      %p57 = scmp.ne.s32.totalorder %s43, %s44
      %p58 = scmp.eq.s32.totalorder %s22, 1
      %p59 = por %p57, %p58
      %p61 = scmp.ne.s32.totalorder %s44, %s60
      %p62 = scmp.eq.s32.totalorder %s22, 0
      %p63 = por %p61, %p62
      %s64 = ssub.s32 %s23, %s35
      %p65 = scmp.eq.s32.totalorder %s64, 0
      %s67 = sadd.s32 %s66, 1
      %s68 = scalar_select %p65, %s66, %s67
      %p71 = pneg %p65
      %p72 = scmp.eq.s32.totalorder %s16, 1
      %p73 = por %p71, %p72
      %p74 = scmp.ne.s32.totalorder %s66, %s69
      %p75 = scmp.eq.s32.totalorder %s16, 0
      %p76 = por %p74, %p75
      %p77 = scmp.ne.s32.totalorder %s66, %s69
      %p78 = scmp.eq.s32.totalorder %s21, 1
      %p79 = por %p77, %p78
      %p80 = scmp.ne.s32.totalorder %s69, %s70
      %p81 = scmp.eq.s32.totalorder %s21, 0
      %p82 = por %p80, %p81
      %p83 = scmp.ne.s32.totalorder %s69, %s70
      %p84 = scmp.eq.s32.totalorder %s22, 1
      %p85 = por %p83, %p84
      %p87 = scmp.ne.s32.totalorder %s70, %s86
      %p88 = scmp.eq.s32.totalorder %s22, 0
      %p89 = por %p87, %p88
      %s90 = ssub.s32 %s24, %s31
      %p91 = scmp.eq.s32.totalorder %s90, 0
      %s93 = sadd.s32 %s92, 1
      %s94 = scalar_select %p91, %s92, %s93
      %p97 = pneg %p91
      %p98 = scmp.eq.s32.totalorder %s16, 1
      %p99 = por %p97, %p98
      %p100 = scmp.ne.s32.totalorder %s92, %s95
      %p101 = scmp.eq.s32.totalorder %s16, 0
      %p102 = por %p100, %p101
      %p103 = scmp.ne.s32.totalorder %s92, %s95
      %p104 = scmp.eq.s32.totalorder %s21, 1
      %p105 = por %p103, %p104
      %p106 = scmp.ne.s32.totalorder %s95, %s96
      %p107 = scmp.eq.s32.totalorder %s21, 0
      %p108 = por %p106, %p107
      %p109 = scmp.ne.s32.totalorder %s95, %s96
      %p110 = scmp.eq.s32.totalorder %s22, 1
      %p111 = por %p109, %p110
      %p113 = scmp.ne.s32.totalorder %s96, %s112
      %p114 = scmp.eq.s32.totalorder %s22, 0
      %p115 = por %p113, %p114
      %s116 = ssub.s32 %s24, %s31
      %p117 = scmp.eq.s32.totalorder %s116, 0
      %s119 = sadd.s32 %s118, 1
      %s120 = scalar_select %p117, %s118, %s119
      %p123 = pneg %p117
      %p124 = scmp.eq.s32.totalorder %s16, 1
      %p125 = por %p123, %p124
      %p126 = scmp.ne.s32.totalorder %s118, %s121
      %p127 = scmp.eq.s32.totalorder %s16, 0
      %p128 = por %p126, %p127
      %p129 = scmp.ne.s32.totalorder %s118, %s121
      %p130 = scmp.eq.s32.totalorder %s21, 1
      %p131 = por %p129, %p130
      %p132 = scmp.ne.s32.totalorder %s121, %s122
      %p133 = scmp.eq.s32.totalorder %s21, 0
      %p134 = por %p132, %p133
      %p135 = scmp.ne.s32.totalorder %s121, %s122
      %p136 = scmp.eq.s32.totalorder %s22, 1
      %p137 = por %p135, %p136
      %p139 = scmp.ne.s32.totalorder %s122, %s138
      %p140 = scmp.eq.s32.totalorder %s22, 0
      %p141 = por %p139, %p140
      %s142 = ssub.s32 %s23, %s35
      %s143 = ssub.s32 %s24, %s31
      %s144 = sor.u32 %s142, %s143
      %p145 = scmp.eq.s32.totalorder %s144, 0
      %s147 = sadd.s32 %s146, 1
      %s148 = scalar_select %p145, %s146, %s147
      %p151 = pneg %p145
      %p152 = scmp.eq.s32.totalorder %s16, 1
      %p153 = por %p151, %p152
      %p154 = scmp.ne.s32.totalorder %s146, %s149
      %p155 = scmp.eq.s32.totalorder %s16, 0
      %p156 = por %p154, %p155
      %p157 = scmp.ne.s32.totalorder %s146, %s149
      %p158 = scmp.eq.s32.totalorder %s21, 1
      %p159 = por %p157, %p158
      %p160 = scmp.ne.s32.totalorder %s149, %s150
      %p161 = scmp.eq.s32.totalorder %s21, 0
      %p162 = por %p160, %p161
      %p163 = scmp.ne.s32.totalorder %s149, %s150
      %p164 = scmp.eq.s32.totalorder %s22, 1
      %p165 = por %p163, %p164
      %p167 = scmp.ne.s32.totalorder %s150, %s166
      %p168 = scmp.eq.s32.totalorder %s22, 0
      %p169 = por %p167, %p168
      %p170 = scmp.le.s32.totalorder 1, %s16
      %p171 = scmp.lt.s32.totalorder %s16, 3
      %p172 = pnand %p170, %p171
      %p173 = pneg %p172
      // Predicated region
      $region9: #{tpu_custom_call.1} parent=5 // pred_check
        _
      $region10: #{tpu_custom_call.1} parent=5 // pred_check_branch
        %175 = sbr.rel (%p172) target = $region12
      $region11: #{tpu_custom_call.1} parent=5 // pred_region
        %s176 = ssub.s32 %s16, 1
        // Predicated region
        $region13: #{tpu_custom_call.1} parent=11 // pred_check
          %p177 = pneg %p108
        $region14: #{tpu_custom_call.1} parent=11 // pred_check_branch
          %179 = sbr.rel (%p177) target = $region16
        $region15: #{tpu_custom_call.1} parent=11 // pred_region
          %p180 = scmp.lt.s32.totalorder %s26, 0
          %s181 = scalar_select %p180, %s26, 0
          %s182 = smul.addr %s181, 4
          %s183 = scalar_lea.vmem %s2, %s182
        $region16: #{tpu_custom_call.1} parent=11 // pred_fallthru
          _
        // Predicated region
        $region17: #{tpu_custom_call.1} parent=11 // pred_check
          %p184 = pneg %p134
        $region18: #{tpu_custom_call.1} parent=11 // pred_check_branch
          %186 = sbr.rel (%p184) target = $region20
        $region19: #{tpu_custom_call.1} parent=11 // pred_region
          %p187 = scmp.lt.s32.totalorder %s26, 0
          %s188 = scalar_select %p187, %s26, 0
          %s189 = smul.addr %s188, 4
          %s190 = scalar_lea.vmem %s3, %s189
        $region20: #{tpu_custom_call.1} parent=11 // pred_fallthru
          _
      $region12: #{tpu_custom_call.1} parent=5 // pred_fallthru
        _
      %p191 = scmp.lt.s32.totalorder %s16, 2
      // Predicated region
      $region21: #{tpu_custom_call.1} parent=5 // pred_check
        %p192 = pneg %p191
      $region22: #{tpu_custom_call.1} parent=5 // pred_check_branch
        %194 = sbr.rel (%p192) target = $region24
      $region23: #{tpu_custom_call.1} parent=5 // pred_region
        // Predicated region
        $region25: #{tpu_custom_call.1} parent=23 // pred_check
          %p195 = pneg %p50
        $region26: #{tpu_custom_call.1} parent=23 // pred_check_branch
          %197 = sbr.rel (%p195) target = $region28
        $region27: #{tpu_custom_call.1} parent=23 // pred_region
          %s198 = sand.u32 %s40, 1
          %s199 = scalar_lea.sflag [#allocation3], %s198
          %s200 = sand.u32 %s40, 1
          %s201 = smul.addr %s200, 8
          %s202 = scalar_lea.vmem [#allocation2], %s201
          %204 = vsyncadd %s199, 0
          %s205 = smul.addr %s24, 2
          %s206 = smul.addr %s23, 2
          %s207 = sadd.s32 %s205, %s206
          %s208 = smul.addr %s207, 4
          %s209 = scalar_lea.hbm %s0, %s208
          %s211 = sshll.u32 %s209, 4
          %s212 = int_to_ptr.hbm [resolvable:$true] %s211
          %s213 = sshll.u32 %s202, 4
          %s214 = int_to_ptr.vmem [resolvable:$true] %s213
          %216 = dma.hbm_to_vmem [thread:$0]  %s212, 128, %s214, %s199
        $region28: #{tpu_custom_call.1} parent=23 // pred_fallthru
          _
        // Predicated region
        $region29: #{tpu_custom_call.1} parent=23 // pred_check
          %p217 = pneg %p76
        $region30: #{tpu_custom_call.1} parent=23 // pred_check_branch
          %219 = sbr.rel (%p217) target = $region32
        $region31: #{tpu_custom_call.1} parent=23 // pred_region
          %p220 = scmp.lt.s32.totalorder %s23, 1
          %s221 = scalar_select %p220, %s23, 1
          %s222 = smul.addr %s221, 2
          %s223 = scalar_lea.vmem %s1, %s222
        $region32: #{tpu_custom_call.1} parent=23 // pred_fallthru
          _
      $region24: #{tpu_custom_call.1} parent=5 // pred_fallthru
        _
      %p224 = scmp.le.s32.totalorder 1, %s16
      %p225 = scmp.lt.s32.totalorder %s16, 3
      %p226 = pnand %p224, %p225
      %p227 = pneg %p226
      // Predicated region
      $region33: #{tpu_custom_call.1} parent=5 // pred_check
        _
      $region34: #{tpu_custom_call.1} parent=5 // pred_check_branch
        %229 = sbr.rel (%p226) target = $region36
      $region35: #{tpu_custom_call.1} parent=5 // pred_region
        %s230 = ssub.s32 %s16, 1
        %s231 = sand.u32 %s43, 1
        %s232 = scalar_lea.sflag [#allocation3], %s231
        %s233 = sand.u32 %s43, 1
        %s234 = smul.addr %s233, 8
        %s235 = scalar_lea.vmem [#allocation2], %s234
        // Predicated region
        $region37: #{tpu_custom_call.1} parent=35 // pred_check
          %p236 = pneg %p56
        $region38: #{tpu_custom_call.1} parent=35 // pred_check_branch
          %238 = sbr.rel (%p236) target = $region40
        $region39: #{tpu_custom_call.1} parent=35 // pred_region
          %240 = dma.done %s232, 128
        $region40: #{tpu_custom_call.1} parent=35 // pred_fallthru
          _
        %s241 = sand.u32 %s43, 1
        %s242 = scalar_lea.sflag [#allocation3], %s241
        %s243 = sand.u32 %s43, 1
        %s244 = smul.addr %s243, 8
        %s245 = scalar_lea.vmem [#allocation2], %s244
        %p246 = pneg %p56
        %p247 = pneg %p53
        %p248 = scmp.lt.s32.totalorder %s25, 1
        %s249 = scalar_select %p248, %s25, 1
        %s250 = smul.addr %s249, 2
        %s251 = scalar_lea.vmem %s1, %s250
        %p252 = pneg %p82
        %p253 = pneg %p79
        %p254 = scmp.lt.s32.totalorder %s26, 0
        %s255 = scalar_select %p254, %s26, 0
        %s256 = smul.addr %s255, 4
        %s257 = scalar_lea.vmem %s2, %s256
        %p258 = pneg %p108
        %p259 = pneg %p105
        %p260 = scmp.lt.s32.totalorder %s26, 0
        %s261 = scalar_select %p260, %s26, 0
        %s262 = smul.addr %s261, 4
        %s263 = scalar_lea.vmem %s3, %s262
        %p264 = pneg %p134
        %p265 = pneg %p131
        %p266 = pneg %p162
        %p267 = pneg %p159
        %s268 = sand.u32 %s149, 1
        %s269 = scalar_lea.sflag [#allocation4], %s268
        %s270 = sand.u32 %s149, 1
        %s271 = smul.addr %s270, 8
        %s272 = scalar_lea.vmem [#allocation5], %s271
        %p273 = scmp.lt.s32.totalorder %s25, 1
        %s274 = scalar_select %p273, %s25, 1
        %s275 = smul.addr %s274, 2
        %s276 = scalar_lea.vmem %s1, %s275
        %p277 = scmp.lt.s32.totalorder %s26, 0
        %s278 = scalar_select %p277, %s26, 0
        %s279 = smul.addr %s278, 4
        %s280 = scalar_lea.vmem %s2, %s279
        %p281 = scmp.lt.s32.totalorder %s26, 0
        %s282 = scalar_select %p281, %s26, 0
        %s283 = smul.addr %s282, 4
        %s284 = scalar_lea.vmem %s3, %s283
        %v285 = vld [vmem:[%s235] sm:$0xff]
        %v286 = vld [vmem:[%s276] sm:$0x3]
        %v288 = vperm.slane %v286, 0
        %v289 = vperm.slane %v286, 1
        %v290 = vrot.slane %v289, 4
        %vm291 = vcmask 1043456
        %v292 = vsel %vm291, %v288, %v290
        %v294 = vmul.f32 %v285, %v292
        %v295 = vmul.f32 %v294, %v292
        %vm298 = vcmask 1040384
        %v299 = vsel %vm298, %v288, 0.0
        %v300 = vsel %vm298, %v289, 0.0
        %v301 = vadd.f32 %v299, %v300
        %302 = vadd.xlane.f32.xlu0 %v301
        %v303 = vpop.xlane.xlu0 %302
        %305 = vst [vmem:[#allocation1] ss:$2 sm:$0xff] %v295
        %v306 = vld.sshfl [vmem:[#allocation1] sm:$0xff pattern:$0x75316420]
        %v307 = vld.sshfl [vmem:[#allocation1 + $0x8] sm:$0xff pattern:$0x75316420]
        %v310 = vsel %vm291, %v306, 0.0
        %v311 = vsel %vm291, %v307, 0.0
        %v312 = vadd.f32 %v310, %v311
        %313 = vadd.xlane.f32.xlu0 %v312
        %v314 = vpop.xlane.xlu0 %313
        %v315 = vmul.f32 %v295, %v295
        %317 = vst [vmem:[#allocation1] ss:$2 sm:$0xff] %v315
        %v318 = vld.sshfl [vmem:[#allocation1] sm:$0xff pattern:$0x75316420]
        %v319 = vld.sshfl [vmem:[#allocation1 + $0x8] sm:$0xff pattern:$0x75316420]
        %v322 = vsel %vm291, %v318, 0.0
        %v323 = vsel %vm291, %v319, 0.0
        %v324 = vadd.f32 %v322, %v323
        %325 = vadd.xlane.f32.xlu0 %v324
        %v326 = vpop.xlane.xlu0 %325
        %v327 = vsub.f32 1.0, %v286
        %v329 = vperm.slane %v327, 0
        %v330 = vperm.slane %v327, 1
        %v331 = vrot.slane %v330, 4
        %v332 = vsel %vm291, %v329, %v331
        %v334 = vmul.f32 %v285, %v332
        %v335 = vmul.f32 %v334, %v332
        %337 = vst [vmem:[#allocation1] ss:$2 sm:$0xff] %v335
        %v338 = vld.sshfl [vmem:[#allocation1] sm:$0xff pattern:$0x75316420]
        %v339 = vld.sshfl [vmem:[#allocation1 + $0x8] sm:$0xff pattern:$0x75316420]
        %v342 = vsel %vm291, %v338, 0.0
        %v343 = vsel %vm291, %v339, 0.0
        %v344 = vadd.f32 %v342, %v343
        %345 = vadd.xlane.f32.xlu0 %v344
        %v346 = vpop.xlane.xlu0 %345
        %v347 = vmul.f32 %v335, %v335
        %349 = vst [vmem:[#allocation1] ss:$2 sm:$0xff] %v347
        %v350 = vld.sshfl [vmem:[#allocation1] sm:$0xff pattern:$0x75316420]
        %v351 = vld.sshfl [vmem:[#allocation1 + $0x8] sm:$0xff pattern:$0x75316420]
        %v354 = vsel %vm291, %v350, 0.0
        %v355 = vsel %vm291, %v351, 0.0
        %v356 = vadd.f32 %v354, %v355
        %357 = vadd.xlane.f32.xlu0 %v356
        %v358 = vpop.xlane.xlu0 %357
        %v359 = vld [vmem:[%s280] sm:$0xf]
        %v360 = vld [vmem:[%s284] sm:$0xf]
        %v361 = vadd.f32 %v303, 1e-05
        %v362 = vsub.f32 256.0, %v303
        %v363 = vadd.f32 %v362, 1e-05
        %v364 = vperm.slane %v361, 0
        %v365 = vrcp.pop %v364
        %v366 = vmul.f32 %v364, %v365
        %v367 = vsub.f32 1.0, %v366
        %v368 = vmul.f32 %v365, %v367
        %v369 = vadd.f32 %v365, %v368
        %vm370 = vweird.f32 %v364
        %vm371 = vweird.f32 %v365
        %vm372 = vmor %vm370, %vm371
        %v373 = vsel %vm372, %v365, %v369
        %v374 = vand.u32 2147483647, %v364
        %vm375 = vcmp.eq.f32.partialorder %v374, 8.507059e+37
        %v376 = vand.u32 %v364, 2147483648
        %v377 = vor.u32 1.1754944e-38, %v376
        %v378 = vsel %vm375, %v377, %v373
        %v379 = vmul.f32 %v314, %v378
        %v380 = vperm.slane %v363, 0
        %v381 = vrcp.pop %v380
        %v382 = vmul.f32 %v380, %v381
        %v383 = vsub.f32 1.0, %v382
        %v384 = vmul.f32 %v381, %v383
        %v385 = vadd.f32 %v381, %v384
        %vm386 = vweird.f32 %v380
        %vm387 = vweird.f32 %v381
        %vm388 = vmor %vm386, %vm387
        %v389 = vsel %vm388, %v381, %v385
        %v390 = vand.u32 2147483647, %v380
        %vm391 = vcmp.eq.f32.partialorder %v390, 8.507059e+37
        %v392 = vand.u32 %v380, 2147483648
        %v393 = vor.u32 1.1754944e-38, %v392
        %v394 = vsel %vm391, %v393, %v389
        %v395 = vmul.f32 %v346, %v394
        %v396 = vmul.f32 %v379, 2.0
        %v397 = vmul.f32 %v396, %v314
        %v398 = vsub.f32 %v326, %v397
        %v399 = vmul.f32 %v379, 256.0
        %v400 = vmul.f32 %v399, %v379
        %v401 = vadd.f32 %v398, %v400
        %v402 = vmul.f32 %v395, 2.0
        %v403 = vmul.f32 %v402, %v346
        %v404 = vsub.f32 %v358, %v403
        %v405 = vmul.f32 %v395, 256.0
        %v406 = vmul.f32 %v405, %v395
        %v407 = vadd.f32 %v404, %v406
        %v408 = vmul.f32 %v401, %v378
        %v409 = vadd.f32 %v408, 1e-05
        %v410 = vrsqrt.pop %v409
        %v411 = vmul.f32 %v410, %v409
        %v412 = vmul.f32 %v411, %v410
        %v413 = vmul.f32 0.5, %v412
        %v414 = vsub.f32 1.5, %v413
        %v415 = vmul.f32 %v410, %v414
        %v416 = vmul.f32 %v409, %v415
        %vm417 = vcmp.eq.f32.partialorder %v409, inf
        %v418 = vsel %vm417, %v409, %v416
        %vm419 = vcmp.eq.f32.partialorder %v409, 0.0
        %v420 = vand.u32 %v409, 2147483648
        %v421 = vsel %vm419, %v420, %v418
        %v422 = vmul.f32 %v407, %v394
        %v423 = vadd.f32 %v422, 1e-05
        %v424 = vrsqrt.pop %v423
        %v425 = vmul.f32 %v424, %v423
        %v426 = vmul.f32 %v425, %v424
        %v427 = vmul.f32 0.5, %v426
        %v428 = vsub.f32 1.5, %v427
        %v429 = vmul.f32 %v424, %v428
        %v430 = vmul.f32 %v423, %v429
        %vm431 = vcmp.eq.f32.partialorder %v423, inf
        %v432 = vsel %vm431, %v423, %v430
        %vm433 = vcmp.eq.f32.partialorder %v423, 0.0
        %v434 = vand.u32 %v423, 2147483648
        %v435 = vsel %vm433, %v434, %v432
        %v436 = vrcp.pop %v421
        %v437 = vmul.f32 %v421, %v436
        %v438 = vsub.f32 1.0, %v437
        %v439 = vmul.f32 %v436, %v438
        %v440 = vadd.f32 %v436, %v439
        %vm441 = vweird.f32 %v421
        %vm442 = vweird.f32 %v436
        %vm443 = vmor %vm441, %vm442
        %v444 = vsel %vm443, %v436, %v440
        %v445 = vand.u32 2147483647, %v421
        %vm446 = vcmp.eq.f32.partialorder %v445, 8.507059e+37
        %v447 = vand.u32 %v421, 2147483648
        %v448 = vor.u32 1.1754944e-38, %v447
        %v449 = vsel %vm446, %v448, %v444
        %v450 = vmul.f32 %v435, %v449
        %v451 = vmul.f32 %v359, %v450
        %v452 = vmul.f32 %v395, %v360
        %v453 = vmul.f32 %v379, %v451
        %v454 = vsub.f32 %v452, %v453
        %456 = vset.pattern.permute.xlu0 0
        %457 = vperm.xlu0 %456, %v451
        %v458 = vpop.permute.xlu0 %457
        %v460 = vunpack.c.l.s4 839922192
        %v461 = vunpack.c.0.s8 %v460
        %v462 = vperm.slane %v458, %v461
        %v464 = vmul.f32 %v294, %v462
        %466 = vset.pattern.permute.xlu0 0
        %467 = vperm.xlu0 %466, %v454
        %v468 = vpop.permute.xlu0 %467
        %v470 = vunpack.c.l.s4 839922192
        %v471 = vunpack.c.0.s8 %v470
        %v472 = vperm.slane %v468, %v471
        %v474 = vadd.f32 %v464, %v472
        %v475 = vsub.f32 %v474, %v285
        %v476 = vmul.f32 %v475, %v292
        %v477 = vadd.f32 %v285, %v476
        %478 = vst [vmem:[%s272] sm:$0xff] %v477
        %s479 = sand.u32 %s149, 1
        %s480 = scalar_lea.sflag [#allocation4], %s479
        %s481 = sand.u32 %s149, 1
        %s482 = smul.addr %s481, 8
        %s483 = scalar_lea.vmem [#allocation5], %s482
        // Predicated region
        $region41: #{tpu_custom_call.1} parent=35 // pred_check
          %p484 = pneg %p159
        $region42: #{tpu_custom_call.1} parent=35 // pred_check_branch
          %486 = sbr.rel (%p484) target = $region44
        $region43: #{tpu_custom_call.1} parent=35 // pred_region
          %488 = vsyncadd %s480, 0
          %s489 = smul.addr %s26, 2
          %s490 = smul.addr %s25, 2
          %s491 = sadd.s32 %s489, %s490
          %s492 = smul.addr %s491, 4
          %s493 = scalar_lea.hbm %s4, %s492
          %s495 = sshll.u32 %s483, 4
          %s496 = int_to_ptr.vmem [resolvable:$true] %s495
          %s497 = sshll.u32 %s493, 4
          %s498 = int_to_ptr.hbm [resolvable:$true] %s497
          %500 = dma.vmem_to_hbm [thread:$0]  %s496, 128, %s498, %s480
        $region44: #{tpu_custom_call.1} parent=35 // pred_fallthru
          _
      $region36: #{tpu_custom_call.1} parent=5 // pred_fallthru
        _
      %p501 = scmp.le.s32.totalorder 2, %s16
      // Predicated region
      $region45: #{tpu_custom_call.1} parent=5 // pred_check
        %p502 = pneg %p501
      $region46: #{tpu_custom_call.1} parent=5 // pred_check_branch
        %504 = sbr.rel (%p502) target = $region48
      $region47: #{tpu_custom_call.1} parent=5 // pred_region
        %s505 = ssub.s32 %s16, 2
        // Predicated region
        $region49: #{tpu_custom_call.1} parent=47 // pred_check
          %p506 = pneg %p165
        $region50: #{tpu_custom_call.1} parent=47 // pred_check_branch
          %508 = sbr.rel (%p506) target = $region52
        $region51: #{tpu_custom_call.1} parent=47 // pred_region
          %s509 = sand.u32 %s150, 1
          %s510 = scalar_lea.sflag [#allocation4], %s509
          %s511 = sand.u32 %s150, 1
          %s512 = smul.addr %s511, 8
          %s513 = scalar_lea.vmem [#allocation5], %s512
          %515 = dma.done %s510, 128
        $region52: #{tpu_custom_call.1} parent=47 // pred_fallthru
          _
      $region48: #{tpu_custom_call.1} parent=5 // pred_fallthru
        _
    $region6: #{tpu_custom_call.1} parent=1 // loop_footer
      %s20 = sadd.s32 1, %s16
    $region7: #{tpu_custom_call.1} parent=1 // loop_footer_branch
      %15 = sbr.rel target = $region3
    $region8: #{tpu_custom_call.1} parent=1 // loop_exit
      _
    %516 = vsyncpa [#allocation3], 1
    %s517 = scalar_lea.sflag [#allocation3], 1
    %518 = vsyncpa %s517, 1
    %519 = vsyncpa [#allocation4], 1
    %s520 = scalar_lea.sflag [#allocation4], 1
    %521 = vsyncpa %s520, 1

</llo_original>
